<compile_context>
chip_gen: v5e
topology: v5e:2x2
jax: 0.10.0
libtpu: 0.0.40
codegen_flags: <defaults>
</compile_context>

<pallas_src>
import functools

import jax
import jax.numpy as jnp
from jax.experimental import pallas as pl
from jax.experimental.pallas import tpu as pltpu


# ----------------------------------------------------------------------------
# Fused transposed GEMM + bias + activation Pallas kernel (lane-dense output)
# ----------------------------------------------------------------------------
def _gemm_t_kernel(wT_ref, aT_ref, b_ref, o_ref, *, act):
    # f32 accumulate on the MXU; epilogue math in f32 (safe on v5e too).
    x = jnp.dot(wT_ref[...], aT_ref[...], preferred_element_type=jnp.float32)
    x = x + b_ref[...]                      # b_ref: (N,1) broadcasts over lanes
    if act == "relu":
        x = jnp.maximum(x, 0.0)
    elif act == "leaky01":                  # LeakyReLU(0.1) used by the conv() helper
        x = jnp.where(x >= 0, x, 0.1 * x)
    o_ref[...] = x.astype(o_ref.dtype)


def _row_tiling(M, max_tm=4096):
    """Pick (Mp, tm) for the lane (M) axis: tm multiple of 128 dividing M when
    possible, preferring >=2 grid steps (v7x megacore); otherwise a single
    full-extent block (no (8,128) constraint, no padding)."""
    if M % 128 == 0:
        cands = [t for t in range(128, min(M, max_tm) + 1, 128) if M % t == 0]
        proper = [t for t in cands if M // t >= 2]
        return M, (max(proper) if proper else max(cands))
    if M <= 8192:
        return M, M                         # single full-extent block
    Mp = ((M + 1023) // 1024) * 1024        # fallback (not hit at these shapes)
    return Mp, 1024


def matmul_t_bias_act(aT, wT, b, act="none", out_dtype=jnp.float32, max_tm=4096):
    """out^T = act(wT @ aT + b).  aT:[K,M]  wT:[N,K]  b:[N]  ->  out^T:[N,M]."""
    K, M = aT.shape
    N = wT.shape[0]
    Mp, tm = _row_tiling(M, max_tm)
    if Mp != M:
        aT = jnp.pad(aT, ((0, 0), (0, Mp - M)))
    b2 = b.reshape(N, 1).astype(jnp.float32)

    out = pl.pallas_call(
        functools.partial(_gemm_t_kernel, act=act),
        out_shape=jax.ShapeDtypeStruct((N, Mp), out_dtype),
        grid_spec=pltpu.PrefetchScalarGridSpec(
            num_scalar_prefetch=0,
            grid=(Mp // tm,),
            in_specs=[
                pl.BlockSpec((N, K), lambda i: (0, 0)),    # weights (resident)
                pl.BlockSpec((K, tm), lambda i: (0, i)),   # K contiguous strips
                pl.BlockSpec((N, 1), lambda i: (0, 0)),    # bias
            ],
            out_specs=pl.BlockSpec((N, tm), lambda i: (0, i)),  # lane-dense
        ),
        compiler_params=pltpu.CompilerParams(dimension_semantics=("parallel",)),
    )(wT, aT, b2)
    return out if Mp == M else out[:, :M]


# ----------------------------------------------------------------------------
# Fused relation + reverse-relation MLP (both heads, one Pallas call)
# ----------------------------------------------------------------------------
def _rel_mlp_kernel(x_ref, w1_ref, b1_ref, w2_ref, b2_ref, o_ref):
    h = jnp.dot(x_ref[...], w1_ref[...], preferred_element_type=jnp.float32)
    h = h + b1_ref[...]
    h = jnp.where(h >= 0, h, 0.01 * h)       # nn.LeakyReLU() default slope
    o = jnp.dot(h, w2_ref[...], preferred_element_type=jnp.float32)
    o = o + b2_ref[...]
    o_ref[...] = o.astype(o_ref.dtype)


def rel_mlp_fused(x, w1, b1, w2, b2):
    """x:[M,word]  w1:[word,4E]  w2:[4E,2E] (block-diag)  ->  [M,2E]."""
    M, K = x.shape
    N1 = w1.shape[1]
    N2 = w2.shape[1]
    return pl.pallas_call(
        _rel_mlp_kernel,
        out_shape=jax.ShapeDtypeStruct((M, N2), jnp.float32),
        grid_spec=pltpu.PrefetchScalarGridSpec(
            num_scalar_prefetch=0,
            grid=(1,),
            in_specs=[
                pl.BlockSpec((M, K), lambda i: (0, 0)),
                pl.BlockSpec((K, N1), lambda i: (0, 0)),
                pl.BlockSpec((1, N1), lambda i: (0, 0)),
                pl.BlockSpec((N1, N2), lambda i: (0, 0)),
                pl.BlockSpec((1, N2), lambda i: (0, 0)),
            ],
            out_specs=pl.BlockSpec((M, N2), lambda i: (0, 0)),
        ),
        compiler_params=pltpu.CompilerParams(dimension_semantics=("arbitrary",)),
    )(x, w1, b1.reshape(1, N1), w2, b2.reshape(1, N2))


# ----------------------------------------------------------------------------
# Conv via transposed im2col (CNHW layout) + Pallas GEMM
# ----------------------------------------------------------------------------
def im2col_T(x_cnhw, k, stride, pad):
    """x: [C,N,H,W] -> patches^T [k*k*C, N*OH*OW] (K order = (ki,kj,c))."""
    C, N, H, W = x_cnhw.shape
    xp = jnp.pad(x_cnhw, ((0, 0), (0, 0), (pad, pad), (pad, pad)))
    OH = (H + 2 * pad - k) // stride + 1
    OW = (W + 2 * pad - k) // stride + 1
    cols = []
    for i in range(k):
        for j in range(k):
            cols.append(xp[:, :,
                           i:i + stride * (OH - 1) + 1:stride,
                           j:j + stride * (OW - 1) + 1:stride])
    pat = jnp.stack(cols, axis=0)                       # [k*k, C, N, OH, OW]
    return pat.reshape(k * k * C, N * OH * OW), OH, OW


def conv_leaky_T(x_cnhw, wT, b, k, stride, pad, out_dtype=jnp.bfloat16):
    """Conv2d(padding=(k-1)//2) + LeakyReLU(0.1).  wT: [C_out, C_in*k*k] (bf16).
    Input/output feature maps are CNHW."""
    C, N, H, W = x_cnhw.shape
    patT, OH, OW = im2col_T(x_cnhw, k, stride, pad)     # bf16 [K, M]
    outT = matmul_t_bias_act(patT, wT, b, act="leaky01", out_dtype=out_dtype)
    return outT.reshape(wT.shape[0], N, OH, OW)


def obs_encoder(t_obs_nchw, p):
    """t_obs_nchw: [N,1,160,160] -> [N, embd_dim]  (conv x4 -> flatten -> fc -> relu)."""
    # NCHW -> CNHW, bf16 MXU operands (accumulate stays f32 in-kernel).
    x = jnp.transpose(t_obs_nchw, (1, 0, 2, 3)).astype(jnp.bfloat16)
    x = conv_leaky_T(x, p["c1_wT"], p["c1_b"], 3, 2, 1)   # 160 -> 80
    x = conv_leaky_T(x, p["c2_wT"], p["c2_b"], 4, 3, 1)   # 80  -> 27
    x = conv_leaky_T(x, p["c3_wT"], p["c3_b"], 4, 3, 1)   # 27  -> 9
    x = conv_leaky_T(x, p["c4_wT"], p["c4_b"], 4, 3, 1)   # 9   -> 3
    # nn.Flatten flattens NCHW ordering (C,H,W) = 16*3*3 = 144
    n = x.shape[1]
    feat = jnp.transpose(x, (1, 0, 2, 3)).reshape(n, -1).astype(jnp.float32)
    # Tiny fc (M=bs*sl, K=144, N=embd_dim) left to XLA per perf review.
    h = jnp.dot(feat, p["fc_w"], preferred_element_type=jnp.float32) + p["fc_b"]
    return jnp.maximum(h, 0.0)


# ----------------------------------------------------------------------------
# Parameters (deterministic, PyTorch-Linear-style uniform init)
# ----------------------------------------------------------------------------
def init_pgnn_params(key, embd_dim, output_dim, word_embd_dim):
    def lin(k, fan_in, fan_out):
        k1, k2 = jax.random.split(k)
        bound = 1.0 / jnp.sqrt(float(fan_in))
        w = jax.random.uniform(k1, (fan_in, fan_out), jnp.float32, -bound, bound)
        b = jax.random.uniform(k2, (fan_out,), jnp.float32, -bound, bound)
        return w, b

    def conv_wT(k, c_in, c_out, ksz):
        # stored transposed im2col-style [C_out, C_in*k*k], bf16 MXU operand
        k1, k2 = jax.random.split(k)
        fan_in = c_in * ksz * ksz
        bound = 1.0 / jnp.sqrt(float(fan_in))
        w = jax.random.uniform(k1, (c_out, fan_in), jnp.float32, -bound, bound)
        b = jax.random.uniform(k2, (c_out,), jnp.float32, -bound, bound)
        return w.astype(jnp.bfloat16), b

    keys = jax.random.split(key, 10)
    p = {}
    p["rel_w1"], p["rel_b1"] = lin(keys[0], word_embd_dim, 2 * embd_dim)
    p["rel_w2"], p["rel_b2"] = lin(keys[1], 2 * embd_dim, embd_dim)
    p["rrel_w1"], p["rrel_b1"] = lin(keys[2], word_embd_dim, 2 * embd_dim)
    p["rrel_w2"], p["rrel_b2"] = lin(keys[3], 2 * embd_dim, embd_dim)
    p["c1_wT"], p["c1_b"] = conv_wT(keys[4], 1, 16, 3)
    p["c2_wT"], p["c2_b"] = conv_wT(keys[5], 16, 16, 4)
    p["c3_wT"], p["c3_b"] = conv_wT(keys[6], 16, 16, 4)
    p["c4_wT"], p["c4_b"] = conv_wT(keys[7], 16, 16, 4)
    p["fc_w"], p["fc_b"] = lin(keys[8], 144, embd_dim)
    p["dec_w"], p["dec_b"] = lin(keys[9], embd_dim, output_dim)

    # Fused relation-encoder params (one Pallas call handles both heads):
    p["relmlp_w1"] = jnp.concatenate([p["rel_w1"], p["rrel_w1"]], axis=1)  # [word, 4E] (=128 lanes)
    p["relmlp_b1"] = jnp.concatenate([p["rel_b1"], p["rrel_b1"]])          # [4E]
    w2 = jnp.zeros((4 * embd_dim, 2 * embd_dim), jnp.float32)              # block-diagonal
    w2 = w2.at[: 2 * embd_dim, :embd_dim].set(p["rel_w2"])
    w2 = w2.at[2 * embd_dim:, embd_dim:].set(p["rrel_w2"])
    p["relmlp_w2"] = w2
    p["relmlp_b2"] = jnp.concatenate([p["rel_b2"], p["rrel_b2"]])          # [2E]
    # NOTE: init_obs / gaussian_init are built in __init__ but unused in PGNN.forward.
    return p


# ----------------------------------------------------------------------------
# PGNN forward
# ----------------------------------------------------------------------------
def pgnn_forward(params, obs_v, obs_w, rel_lang_embd, *, embd_dim, particle_num,
                 output_dim, num_layers, key):
    bs, sl = obs_v.shape[0], obs_v.shape[1]
    t_obs = obs_v.reshape(-1, 1, 160, 160)                   # [bs*sl, 1, 160, 160]
    t_w_obs = obs_w.reshape(bs, -1, sl, 1)                   # [bs, 1, sl, 1]
    nl = t_w_obs.shape[1] + 1

    # relation / reverse-relation encoders: ONE fused Pallas call
    r = rel_lang_embd.shape[1]
    x2 = rel_lang_embd.reshape(bs * r, -1).astype(jnp.float32)
    both = rel_mlp_fused(x2, params["relmlp_w1"], params["relmlp_b1"],
                         params["relmlp_w2"], params["relmlp_b2"])
    rel_embd = both[:, :embd_dim].reshape(bs, r, embd_dim)
    rev_rel_embd = both[:, embd_dim:].reshape(bs, r, embd_dim)
    rel = jnp.concatenate([rel_embd, rev_rel_embd], axis=1)  # [bs, 2r, embd_dim]

    # observation encoder (convs as lane-dense Pallas GEMMs via im2col)
    h_obs = obs_encoder(t_obs, params).reshape(bs, -1, sl, embd_dim)
    o_in = (h_obs, t_w_obs)

    # hidden-feature init: h_v ~ N(0, 0.2), h_w = log(1 / particle_num)
    kv = jax.random.fold_in(key, 1)
    h_v = 0.2 * jax.random.normal(kv, (bs, nl, particle_num, embd_dim), jnp.float32)
    h_w = jnp.full((bs, nl, particle_num, 1), jnp.log(1.0 / particle_num), jnp.float32)

    # placement decoder + tanh/2 + 0.5 — microscopic GEMM, left to XLA
    def decode(hv):
        flat = hv.reshape(-1, embd_dim)
        out = jnp.dot(flat, params["dec_w"], preferred_element_type=jnp.float32)
        out = jnp.tanh(out + params["dec_b"]) * 0.5 + 0.5
        return out.reshape(bs, nl, particle_num, output_dim)

    p_out = decode(h_v)
    output_history = [(p_out, h_w)]

    # TODO(synk): PGNN_Layer (self.model) is not defined in the reference source,
    # so the num_layers particle message-passing iterations cannot be reproduced
    # faithfully; rel / o_in / num_layers feed only that missing layer.
    del rel, o_in, num_layers

    return p_out, h_w, output_history


# ----------------------------------------------------------------------------
if __name__ == "__main__":
    key = jax.random.PRNGKey(0)
    bs, sl = 2, 2
    embd_dim, particle_num, output_dim = 32, 8, 3
    word_embd_dim = 128
    num_layers = 2

    kp, k1, k2, k3 = jax.random.split(key, 4)
    params = init_pgnn_params(kp, embd_dim, output_dim, word_embd_dim)

    # obs: list-of-tuples in torch; here dense arrays with the same semantics
    obs_v = jax.random.normal(k1, (bs, sl, 160, 160), jnp.float32)
    obs_w = jax.random.normal(k2, (bs, sl), jnp.float32)
    rel_lang_embd = jax.random.normal(k3, (bs, 4, word_embd_dim), jnp.float32)

    p_out, h_w_out, hist = pgnn_forward(
        params, obs_v, obs_w, rel_lang_embd,
        embd_dim=embd_dim, particle_num=particle_num, output_dim=output_dim,
        num_layers=num_layers, key=key)

    jax.block_until_ready(p_out)
    jax.block_until_ready(h_w_out)
    nl = 1 + 1  # t_w_obs.size(1) + 1
    assert p_out.shape == (bs, nl, particle_num, output_dim)
    assert h_w_out.shape == (bs, nl, particle_num, 1)
    assert len(hist) == 1
    print("KERNEL_OK")
</pallas_src>

<mosaic_0001>
module attributes {stable_mosaic.version = 11 : i64} {
  func.func @_rel_mlp_kernel(%arg0: i32, %arg1: memref<8x128xf32, #tpu.memory_space<vmem>>, %arg2: memref<128x128xf32, #tpu.memory_space<vmem>>, %arg3: memref<1x128xf32, #tpu.memory_space<vmem>>, %arg4: memref<128x64xf32, #tpu.memory_space<vmem>>, %arg5: memref<1x64xf32, #tpu.memory_space<vmem>>, %arg6: memref<8x64xf32, #tpu.memory_space<vmem>>) attributes {dimension_semantics = [#tpu.dimension_semantics<arbitrary>], iteration_bounds = array<i64: 1>, scalar_prefetch = 0 : i64, scratch_operands = 0 : i64, tpu.core_type = #tpu.core_type<tc>, window_params = [{pipeline_mode = #tpu.pipeline_mode<synchronous>, transform_indices = @transform_0, window_bounds = array<i64: 8, 128>}, {pipeline_mode = #tpu.pipeline_mode<synchronous>, transform_indices = @transform_1, window_bounds = array<i64: 128, 128>}, {pipeline_mode = #tpu.pipeline_mode<synchronous>, transform_indices = @transform_2, window_bounds = array<i64: 1, 128>}, {pipeline_mode = #tpu.pipeline_mode<synchronous>, transform_indices = @transform_3, window_bounds = array<i64: 128, 64>}, {pipeline_mode = #tpu.pipeline_mode<synchronous>, transform_indices = @transform_4, window_bounds = array<i64: 1, 64>}, {pipeline_mode = #tpu.pipeline_mode<synchronous>, transform_indices = @transform_5, window_bounds = array<i64: 8, 64>}]} {
    %c0 = arith.constant 0 : index
    %c0_0 = arith.constant 0 : index
    %0 = vector.load %arg1[%c0, %c0_0] : memref<8x128xf32, #tpu.memory_space<vmem>>, vector<8x128xf32>
    %c0_1 = arith.constant 0 : index
    %c0_2 = arith.constant 0 : index
    %1 = vector.load %arg2[%c0_1, %c0_2] : memref<128x128xf32, #tpu.memory_space<vmem>>, vector<128x128xf32>
    %cst = arith.constant dense<0.000000e+00> : vector<8x128xf32>
    %2 = tpu.matmul %0, %1, %cst {dimension_numbers = #tpu.dot_dimension_numbers<[1], [0], [0], [1], [0, 0, 1, 1], [], []>} : vector<8x128xf32>, vector<128x128xf32>, vector<8x128xf32> -> vector<8x128xf32>
    %c0_3 = arith.constant 0 : index
    %c0_4 = arith.constant 0 : index
    %3 = vector.load %arg3[%c0_3, %c0_4] : memref<1x128xf32, #tpu.memory_space<vmem>>, vector<1x128xf32>
    %4 = vector.broadcast %3 : vector<1x128xf32> to vector<8x128xf32>
    %5 = arith.addf %2, %4 : vector<8x128xf32>
    %cst_5 = arith.constant 0.000000e+00 : f32
    %6 = vector.broadcast %cst_5 : f32 to vector<8x128xf32>
    %7 = arith.cmpf oge, %5, %6 : vector<8x128xf32>
    %cst_6 = arith.constant 0.00999999977 : f32
    %8 = vector.broadcast %cst_6 : f32 to vector<8x128xf32>
    %9 = arith.mulf %8, %5 : vector<8x128xf32>
    %10 = arith.select %7, %5, %9 : vector<8x128xi1>, vector<8x128xf32>
    %c0_7 = arith.constant 0 : index
    %c0_8 = arith.constant 0 : index
    %11 = vector.load %arg4[%c0_7, %c0_8] : memref<128x64xf32, #tpu.memory_space<vmem>>, vector<128x64xf32>
    %cst_9 = arith.constant dense<0.000000e+00> : vector<8x64xf32>
    %12 = tpu.matmul %10, %11, %cst_9 {dimension_numbers = #tpu.dot_dimension_numbers<[1], [0], [0], [1], [0, 0, 1, 1], [], []>} : vector<8x128xf32>, vector<128x64xf32>, vector<8x64xf32> -> vector<8x64xf32>
    %c0_10 = arith.constant 0 : index
    %c0_11 = arith.constant 0 : index
    %13 = vector.load %arg5[%c0_10, %c0_11] : memref<1x64xf32, #tpu.memory_space<vmem>>, vector<1x64xf32>
    %14 = vector.broadcast %13 : vector<1x64xf32> to vector<8x64xf32>
    %15 = arith.addf %12, %14 : vector<8x64xf32>
    %c0_12 = arith.constant 0 : index
    %c0_13 = arith.constant 0 : index
    %16 = vector.load %arg6[%c0_12, %c0_13] : memref<8x64xf32, #tpu.memory_space<vmem>>, vector<8x64xf32>
    tpu.vector_store %arg6[%c0_12, %c0_13], %15 {strides = array<i32>} : memref<8x64xf32, #tpu.memory_space<vmem>>, vector<8x64xf32>,
    return
  }
  func.func @transform_0(%arg0: i32) -> (i32, i32) {
    %c0_i32 = arith.constant 0 : i32
    %c0_i32_0 = arith.constant 0 : i32
    %c0_i32_1 = arith.constant 0 : i32
    return %c0_i32, %c0_i32_0 : i32, i32
  }
  func.func @transform_1(%arg0: i32) -> (i32, i32) {
    %c0_i32 = arith.constant 0 : i32
    %c0_i32_0 = arith.constant 0 : i32
    %c0_i32_1 = arith.constant 0 : i32
    return %c0_i32, %c0_i32_0 : i32, i32
  }
  func.func @transform_2(%arg0: i32) -> (i32, i32) {
    %c0_i32 = arith.constant 0 : i32
    %c0_i32_0 = arith.constant 0 : i32
    %c0_i32_1 = arith.constant 0 : i32
    return %c0_i32, %c0_i32_0 : i32, i32
  }
  func.func @transform_3(%arg0: i32) -> (i32, i32) {
    %c0_i32 = arith.constant 0 : i32
    %c0_i32_0 = arith.constant 0 : i32
    %c0_i32_1 = arith.constant 0 : i32
    return %c0_i32, %c0_i32_0 : i32, i32
  }
  func.func @transform_4(%arg0: i32) -> (i32, i32) {
    %c0_i32 = arith.constant 0 : i32
    %c0_i32_0 = arith.constant 0 : i32
    %c0_i32_1 = arith.constant 0 : i32
    return %c0_i32, %c0_i32_0 : i32, i32
  }
  func.func @transform_5(%arg0: i32) -> (i32, i32) {
    %c0_i32 = arith.constant 0 : i32
    %c0_i32_0 = arith.constant 0 : i32
    %c0_i32_1 = arith.constant 0 : i32
    return %c0_i32, %c0_i32_0 : i32, i32
  }
}

</mosaic_0001>

<llo_original>
// kernel: tpu_custom_call.1
$region0: #{tpu_custom_call.1}
  #allocation0 [shape = 'u32[]', space=smem, size = 0x4, offset = 0x4, fixed_abs, tag = 'smem constant byte address 0x4 - core index']
  #allocation1 [shape = 'u32[72,128]{1,0:T(1,128)}', space=vmem, size = 0x9000, scoped, tag = 'internal scratch']
  %s0 = inlined_call_operand.vmem [shape: f32[8,128], index: 0, kind: input, shape index: {}]
  %s1 = inlined_call_operand.vmem [shape: f32[128,128], index: 1, kind: input, shape index: {}]
  %s2 = inlined_call_operand.vmem [shape: f32[1,128], index: 2, kind: input, shape index: {}]
  %s3 = inlined_call_operand.vmem [shape: f32[128,64], index: 3, kind: input, shape index: {}]
  %s4 = inlined_call_operand.vmem [shape: f32[1,64], index: 4, kind: input, shape index: {}]
  %s5 = inlined_call_operand.hbm [shape: f32[8,64], index: 5, kind: output, shape index: {}]
  %s6 = sld [smem:[#allocation0]]
  $region30: #{tpu_custom_call.1} parent=0
    _
  %s8 = ssub.s32 1, %s6
  %s9 = scalar_select 0, %s8, %s6
  $region1: #{tpu_custom_call.1} parent=0
    #allocation2 [shape = 'u8[4096]{0}', space=vmem, size = 0x1000, scoped, tag = 'output window, operand 0, single buffered']
    #allocation3 [shape = 's32[1]{0}', space=sflag, size = 0x4, scoped, tag = 'scoped memory for tpu_custom_call.1']
    %10 = vsyncpa [#allocation3], 0
    // Predicated region
    $region2: #{tpu_custom_call.1} parent=1 // pred_check
      _
    $region3: #{tpu_custom_call.1} parent=1 // pred_check_branch
      %12 = sbr.rel (0) target = $region5
    $region4: #{tpu_custom_call.1} parent=1 // pred_region
      _
    $region5: #{tpu_custom_call.1} parent=1 // pred_fallthru
      _
    // Predicated region
    $region6: #{tpu_custom_call.1} parent=1 // pred_check
      _
    $region7: #{tpu_custom_call.1} parent=1 // pred_check_branch
      %14 = sbr.rel (0) target = $region9
    $region8: #{tpu_custom_call.1} parent=1 // pred_region
      _
    $region9: #{tpu_custom_call.1} parent=1 // pred_fallthru
      _
    // Predicated region
    $region10: #{tpu_custom_call.1} parent=1 // pred_check
      _
    $region11: #{tpu_custom_call.1} parent=1 // pred_check_branch
      %16 = sbr.rel (0) target = $region13
    $region12: #{tpu_custom_call.1} parent=1 // pred_region
      _
    $region13: #{tpu_custom_call.1} parent=1 // pred_fallthru
      _
    // Predicated region
    $region14: #{tpu_custom_call.1} parent=1 // pred_check
      _
    $region15: #{tpu_custom_call.1} parent=1 // pred_check_branch
      %18 = sbr.rel (0) target = $region17
    $region16: #{tpu_custom_call.1} parent=1 // pred_region
      _
    $region17: #{tpu_custom_call.1} parent=1 // pred_fallthru
      _
    // Predicated region
    $region18: #{tpu_custom_call.1} parent=1 // pred_check
      _
    $region19: #{tpu_custom_call.1} parent=1 // pred_check_branch
      %20 = sbr.rel (0) target = $region21
    $region20: #{tpu_custom_call.1} parent=1 // pred_region
      _
    $region21: #{tpu_custom_call.1} parent=1 // pred_fallthru
      _
    %v21 = vld [vmem:[%s0] sm:$0xff]
    %v22 = vld [vmem:[%s1] sm:$0xff]
    %v23 = vld [vmem:[%s1 + $0x8] sm:$0xff]
    %v24 = vld [vmem:[%s1 + $0x10] sm:$0xff]
    %v25 = vld [vmem:[%s1 + $0x18] sm:$0xff]
    %v26 = vld [vmem:[%s1 + $0x20] sm:$0xff]
    %v27 = vld [vmem:[%s1 + $0x28] sm:$0xff]
    %v28 = vld [vmem:[%s1 + $0x30] sm:$0xff]
    %v29 = vld [vmem:[%s1 + $0x38] sm:$0xff]
    %v30 = vld [vmem:[%s1 + $0x40] sm:$0xff]
    %v31 = vld [vmem:[%s1 + $0x48] sm:$0xff]
    %v32 = vld [vmem:[%s1 + $0x50] sm:$0xff]
    %v33 = vld [vmem:[%s1 + $0x58] sm:$0xff]
    %v34 = vld [vmem:[%s1 + $0x60] sm:$0xff]
    %v35 = vld [vmem:[%s1 + $0x68] sm:$0xff]
    %v36 = vld [vmem:[%s1 + $0x70] sm:$0xff]
    %v37 = vld [vmem:[%s1 + $0x78] sm:$0xff]
    %v38 = vld [vmem:[%s2] sm:$0x1]
    %v40 = vperm.slane %v38, 0
    %42 = vmatpush.msra.mxu0 %v37
    %43 = vmatpush.msra.mxu0 %v36
    %44 = vmatpush.msra.mxu0 %v35
    %45 = vmatpush.msra.mxu0 %v34
    %46 = vmatpush.msra.mxu0 %v33
    %47 = vmatpush.msra.mxu0 %v32
    %48 = vmatpush.msra.mxu0 %v31
    %49 = vmatpush.msra.mxu0 %v30
    %50 = vmatpush.msra.mxu0 %v29
    %51 = vmatpush.msra.mxu0 %v28
    %52 = vmatpush.msra.mxu0 %v27
    %53 = vmatpush.msra.mxu0 %v26
    %54 = vmatpush.msra.mxu0 %v25
    %55 = vmatpush.msra.mxu0 %v24
    %56 = vmatpush.msra.mxu0 %v23
    %57 = vmatpush.msra.mxu0 %v22
    %58 = vmatmul.f32.gmra.mxu0 %v21
    %v59 = vpop.f32.mrf.mxu0
    %v60 = vadd.f32 %v40, %v59
    %61 = vdwg.mxu0
    %vm62 = vcmp.ge.f32.partialorder %v60, 0.0
    %v63 = vmul.f32 %v60, 0.01
    %v64 = vsel %vm62, %v60, %v63
    %v65 = vld [vmem:[%s3] sm:$0xff]
    %v66 = vld [vmem:[%s3 + $0x8] sm:$0xff]
    %v67 = vld [vmem:[%s3 + $0x10] sm:$0xff]
    %v68 = vld [vmem:[%s3 + $0x18] sm:$0xff]
    %v69 = vld [vmem:[%s3 + $0x20] sm:$0xff]
    %v70 = vld [vmem:[%s3 + $0x28] sm:$0xff]
    %v71 = vld [vmem:[%s3 + $0x30] sm:$0xff]
    %v72 = vld [vmem:[%s3 + $0x38] sm:$0xff]
    %v73 = vld [vmem:[%s3 + $0x40] sm:$0xff]
    %v74 = vld [vmem:[%s3 + $0x48] sm:$0xff]
    %v75 = vld [vmem:[%s3 + $0x50] sm:$0xff]
    %v76 = vld [vmem:[%s3 + $0x58] sm:$0xff]
    %v77 = vld [vmem:[%s3 + $0x60] sm:$0xff]
    %v78 = vld [vmem:[%s3 + $0x68] sm:$0xff]
    %v79 = vld [vmem:[%s3 + $0x70] sm:$0xff]
    %v80 = vld [vmem:[%s3 + $0x78] sm:$0xff]
    %v81 = vld [vmem:[%s4] sm:$0x1]
    %v83 = vperm.slane %v81, 0
    %85 = vmatpush.msra.mxu0 %v80
    %86 = vmatpush.msra.mxu0 %v79
    %87 = vmatpush.msra.mxu0 %v78
    %88 = vmatpush.msra.mxu0 %v77
    %89 = vmatpush.msra.mxu0 %v76
    %90 = vmatpush.msra.mxu0 %v75
    %91 = vmatpush.msra.mxu0 %v74
    %92 = vmatpush.msra.mxu0 %v73
    %93 = vmatpush.msra.mxu0 %v72
    %94 = vmatpush.msra.mxu0 %v71
    %95 = vmatpush.msra.mxu0 %v70
    %96 = vmatpush.msra.mxu0 %v69
    %97 = vmatpush.msra.mxu0 %v68
    %98 = vmatpush.msra.mxu0 %v67
    %99 = vmatpush.msra.mxu0 %v66
    %100 = vmatpush.msra.mxu0 %v65
    %101 = vmatmul.f32.gmra.mxu0 %v64
    %v102 = vpop.f32.mrf.mxu0
    %v103 = vadd.f32 %v83, %v102
    %104 = vdwg.mxu0
    %vm105 = vcmask 523264
    %106 = vst.msk [vmem:[#allocation2] sm:$0xff] %vm105, %v103
    // Predicated region
    $region22: #{tpu_custom_call.1} parent=1 // pred_check
      _
    $region23: #{tpu_custom_call.1} parent=1 // pred_check_branch
      %108 = sbr.rel (0) target = $region25
    $region24: #{tpu_custom_call.1} parent=1 // pred_region
      %110 = vsyncadd [#allocation3], 0
      %s112 = sshll.u32 [#allocation2], 4
      %s113 = int_to_ptr.vmem [resolvable:$true] %s112
      %s114 = sshll.u32 %s5, 4
      %s115 = int_to_ptr.hbm [resolvable:$true] %s114
      %117 = dma.vmem_to_hbm [thread:$0]  %s113, 128, %s115, [#allocation3]
    $region25: #{tpu_custom_call.1} parent=1 // pred_fallthru
      _
    // Predicated region
    $region26: #{tpu_custom_call.1} parent=1 // pred_check
      _
    $region27: #{tpu_custom_call.1} parent=1 // pred_check_branch
      %119 = sbr.rel (0) target = $region29
    $region28: #{tpu_custom_call.1} parent=1 // pred_region
      %121 = dma.done [#allocation3], 128
    $region29: #{tpu_custom_call.1} parent=1 // pred_fallthru
      _
    %122 = vsyncpa [#allocation3], 1

</llo_original>
